<compile_context>
chip_gen: v5e
topology: v5e:2x2
jax: 0.10.0
libtpu: 0.0.40
codegen_flags: <defaults>
</compile_context>

<pallas_src>
import jax
import jax.numpy as jnp
from jax.experimental import pallas as pl
from jax.experimental.pallas import tpu as pltpu


def _round_up(n, m):
    return ((n + m - 1) // m) * m


def _softplus(x):
    # Matches torch.nn.functional.softplus (beta=1, threshold=20).  Uses only
    # exp/log (no log1p) so it lowers cleanly in both f32 and bf16 in Mosaic.
    one = jnp.asarray(1.0, x.dtype)
    return jnp.where(x > 20.0, x, jnp.log(one + jnp.exp(jnp.minimum(x, 20.0))))


def _softplus_compute_dtype():
    """bf16 softplus chain on v6e / v7x (bf16 VPU+EUP); f32 elsewhere (v5e)."""
    try:
        kind = jax.devices()[0].device_kind.lower()
    except Exception:
        return jnp.float32
    if ("v6" in kind) or ("v7" in kind) or ("7x" in kind):
        return jnp.bfloat16
    return jnp.float32


def _make_mlp_kernel(n_chunks, chunk, compute_dtype):
    """Kernel factory.  Activations are (features, batch_tile): batch on the
    128 lanes, tiny feature dims on sublanes.  The batch tile is processed in
    `chunk`-column pieces (fully-unrolled loop, static 128-aligned slices) so
    the live intermediate h stays within the vreg file per chunk."""

    def kernel(xT_ref,
               w_in_ref, b_in_ref,
               w0_ref, b0_ref,
               w1_ref, b1_ref,
               w2_ref, b2_ref,
               w_sx_ref, w_sh_ref, b_s_ref,
               w_out_ref, b_out_ref,
               oT_ref):
        for c in range(n_chunks):            # static trip count -> unrolled
            lo = c * chunk                   # static, 128-aligned slice start
            xT = xT_ref[:, lo:lo + chunk]    # (Din, chunk) bf16

            # h^T = W_in @ x^T + b_in   (no activation before the fc loop)
            h = (jnp.dot(w_in_ref[...], xT, preferred_element_type=jnp.float32)
                 + b_in_ref[...])

            # for layer in fc_layers: h = dropout(softplus(layer(h)))  (dropout=id)
            for w_ref, b_ref in ((w0_ref, b0_ref), (w1_ref, b1_ref), (w2_ref, b2_ref)):
                z = (jnp.dot(w_ref[...], h.astype(jnp.bfloat16),
                             preferred_element_type=jnp.float32) + b_ref[...])
                h = _softplus(z.astype(compute_dtype))

            # skip: softplus(W_skip @ cat(x, h)^T + b)
            #     = softplus(W_sx @ x^T + W_sh @ h^T + b)     (no concat)
            z = (jnp.dot(w_sx_ref[...], xT, preferred_element_type=jnp.float32)
                 + jnp.dot(w_sh_ref[...], h.astype(jnp.bfloat16),
                           preferred_element_type=jnp.float32)
                 + b_s_ref[...])
            h = _softplus(z.astype(compute_dtype))

            # o^T = W_out @ h^T + b_out   (output_activation is None)
            o = (jnp.dot(w_out_ref[...], h.astype(jnp.bfloat16),
                         preferred_element_type=jnp.float32) + b_out_ref[...])
            oT_ref[:, lo:lo + chunk] = o.astype(oT_ref.dtype)

    return kernel


def mlp_forward(x, params, *, tile_b=2048, chunk_b=512):
    """x: (B, input_dim) f32.  params: PyTorch-layout weights (out, in), biases (out, 1)."""
    batch, input_dim = x.shape
    hidden_dim = params["w_in"].shape[0]
    output_dim = params["w_out"].shape[0]
    compute_dtype = _softplus_compute_dtype()

    # --- batch tiling -------------------------------------------------------
    b128 = _round_up(batch, 128)                       # lane-aligned batch extent
    tile_b = _round_up(min(tile_b, b128), 128)
    # v7x megacore: keep >= 2 grid steps (parallel axis split across 2 TCs)
    # whenever the batch is large enough.  No effect on single-TC v5e/v6e.
    if b128 >= 256:
        tile_b = min(tile_b, _round_up((b128 + 1) // 2, 128))
    # chunk must divide tile_b (both multiples of 128).
    chunk = min(chunk_b, tile_b)
    while tile_b % chunk:
        chunk -= 128
    n_chunks = tile_b // chunk
    grid = (pl.cdiv(batch, tile_b),)
    b_eff = grid[0] * tile_b                           # columns actually computed

    # --- operands (no host-side zero-pad slab: Pallas pads the ragged last
    # block; padded columns are column-independent and never written back) ---
    xT = x.T.astype(jnp.bfloat16)                      # (Din, B)
    # TODO(synk): the x.T / out.T transposes are wrapper-side layout plumbing
    # forced by the (B, D) module interface; feed/consume feature-major
    # tensors (and bf16 output) to eliminate them entirely.

    def w_bf16(name):
        return params[name].astype(jnp.bfloat16)

    def b_slab(name, out_dim):
        # Pre-broadcast bias to (out, chunk): full-shape VPU add in the kernel
        # (no per-layer lane broadcast); still tiny and VMEM-resident.
        return jnp.broadcast_to(
            params[name].astype(jnp.float32).reshape(out_dim, 1), (out_dim, chunk))

    weights = (w_bf16("w_in"), b_slab("b_in", hidden_dim),
               w_bf16("w_fc0"), b_slab("b_fc0", hidden_dim),
               w_bf16("w_fc1"), b_slab("b_fc1", hidden_dim),
               w_bf16("w_fc2"), b_slab("b_fc2", hidden_dim),
               w_bf16("w_skip_x"), w_bf16("w_skip_h"), b_slab("b_skip", hidden_dim),
               w_bf16("w_out"), b_slab("b_out", output_dim))

    # x^T / o^T stream over the batch grid; weights/biases use a constant
    # index_map so they stay VMEM-resident across grid steps.
    x_spec = pl.BlockSpec((input_dim, tile_b), lambda i: (0, i))
    o_spec = pl.BlockSpec((output_dim, tile_b), lambda i: (0, i))
    w_specs = [pl.BlockSpec(w.shape, lambda i: (0, 0)) for w in weights]

    # --- derived VMEM budget (valid on v5e/v6e 128 MiB and v7x 64 MiB) -------
    weight_bytes = sum(int(w.size) * w.dtype.itemsize for w in weights)
    stream_bytes = 2 * (input_dim * tile_b * 2 + output_dim * tile_b * 4)  # dbl-buffered
    scratch_bytes = 8 * hidden_dim * chunk * 4                             # h/z headroom
    vmem_limit = min(32 * 1024 * 1024,
                     max(4 * 1024 * 1024,
                         2 * (weight_bytes + stream_bytes + scratch_bytes)))

    # Advisory cost estimate for XLA's scheduler.
    flops = b_eff * (2 * input_dim * hidden_dim
                     + 6 * hidden_dim * hidden_dim
                     + 2 * (input_dim + hidden_dim) * hidden_dim
                     + 2 * hidden_dim * output_dim)
    transcendentals = 8 * b_eff * hidden_dim           # exp + log x 4 softplus layers
    bytes_accessed = int(xT.size) * 2 + batch * output_dim * 4 + weight_bytes

    kernel = _make_mlp_kernel(n_chunks, chunk, compute_dtype)
    out_t = pl.pallas_call(
        kernel,
        out_shape=jax.ShapeDtypeStruct((output_dim, batch), jnp.float32),
        grid=grid,
        in_specs=[x_spec] + w_specs,
        out_specs=o_spec,
        compiler_params=pltpu.CompilerParams(
            dimension_semantics=("parallel",),
            vmem_limit_bytes=int(vmem_limit)),
        cost_estimate=pl.CostEstimate(
            flops=int(flops), transcendentals=int(transcendentals),
            bytes_accessed=int(bytes_accessed)),
    )(xT, *weights)

    # Back to (B, Dout).  (Layout plumbing, not compute.)
    return out_t.T


def init_params(key, input_dim, hidden_dim, output_dim, hidden_depth=3):
    """PyTorch-style layout/init: W ~ (out, in), b ~ (out, 1), U(-1/sqrt(in), 1/sqrt(in))."""
    def linear(k, fan_in, fan_out):
        kw, kb = jax.random.split(k)
        bound = 1.0 / (fan_in ** 0.5)
        w = jax.random.uniform(kw, (fan_out, fan_in), jnp.float32, -bound, bound)
        b = jax.random.uniform(kb, (fan_out, 1), jnp.float32, -bound, bound)
        return w, b

    keys = jax.random.split(key, 3 + hidden_depth)
    params = {}
    params["w_in"], params["b_in"] = linear(keys[0], input_dim, hidden_dim)
    for i in range(hidden_depth):
        w, b = linear(keys[1 + i], hidden_dim, hidden_dim)
        params[f"w_fc{i}"], params[f"b_fc{i}"] = w, b
    # skip layer: Linear(input_dim + hidden_dim, hidden_dim); split its weight
    # into the x part and the h part so the kernel avoids a concat.
    w_skip, b_skip = linear(keys[1 + hidden_depth], input_dim + hidden_dim, hidden_dim)
    params["w_skip_x"] = w_skip[:, :input_dim]
    params["w_skip_h"] = w_skip[:, input_dim:]
    params["b_skip"] = b_skip
    params["w_out"], params["b_out"] = linear(keys[2 + hidden_depth], hidden_dim, output_dim)
    return params


def mlp_reference(x, params):
    """Pure-JAX f32 reference mirroring the PyTorch forward (sanity check)."""
    def sp(v):
        return jnp.where(v > 20.0, v, jnp.log1p(jnp.exp(jnp.minimum(v, 20.0))))

    def lin(h, w, b):
        return h @ w.T + b[:, 0]

    h = lin(x, params["w_in"], params["b_in"])
    for i in range(3):
        h = sp(lin(h, params[f"w_fc{i}"], params[f"b_fc{i}"]))
    h = sp(x @ params["w_skip_x"].T + h @ params["w_skip_h"].T
           + params["b_skip"][:, 0])
    return lin(h, params["w_out"], params["b_out"])


if __name__ == "__main__":
    batch, input_dim, hidden_dim, output_dim = 8, 16, 32, 8

    key = jax.random.PRNGKey(0)
    kx, kp = jax.random.split(key)
    x = jax.random.normal(kx, (batch, input_dim), jnp.float32)
    params = init_params(kp, input_dim, hidden_dim, output_dim)

    out = mlp_forward(x, params)
    out = jax.block_until_ready(out)

    ref = mlp_reference(x, params)
    assert out.shape == (batch, output_dim)
    # bf16 MXU inputs (f32 accumulation), bf16 softplus on v6e/v7x -> compare
    # against the f32 reference with a correspondingly loosened tolerance.
    assert jnp.allclose(out, ref, atol=5e-2, rtol=5e-2)

    print("KERNEL_OK")
</pallas_src>

<mosaic_0001>
module attributes {stable_mosaic.version = 11 : i64} {
  func.func @kernel(%arg0: i32, %arg1: memref<16x128xbf16, #tpu.memory_space<vmem>>, %arg2: memref<32x16xbf16, #tpu.memory_space<vmem>>, %arg3: memref<32x128xf32, #tpu.memory_space<vmem>>, %arg4: memref<32x32xbf16, #tpu.memory_space<vmem>>, %arg5: memref<32x128xf32, #tpu.memory_space<vmem>>, %arg6: memref<32x32xbf16, #tpu.memory_space<vmem>>, %arg7: memref<32x128xf32, #tpu.memory_space<vmem>>, %arg8: memref<32x32xbf16, #tpu.memory_space<vmem>>, %arg9: memref<32x128xf32, #tpu.memory_space<vmem>>, %arg10: memref<32x16xbf16, #tpu.memory_space<vmem>>, %arg11: memref<32x32xbf16, #tpu.memory_space<vmem>>, %arg12: memref<32x128xf32, #tpu.memory_space<vmem>>, %arg13: memref<8x32xbf16, #tpu.memory_space<vmem>>, %arg14: memref<8x128xf32, #tpu.memory_space<vmem>>, %arg15: memref<8x128xf32, #tpu.memory_space<vmem>>) attributes {dimension_semantics = [#tpu.dimension_semantics<parallel>], iteration_bounds = array<i64: 1>, scalar_prefetch = 0 : i64, scratch_operands = 0 : i64, tpu.core_type = #tpu.core_type<tc>, window_params = [{transform_indices = @transform_0, window_bounds = array<i64: 16, 128>}, {pipeline_mode = #tpu.pipeline_mode<synchronous>, transform_indices = @transform_1, window_bounds = array<i64: 32, 16>}, {pipeline_mode = #tpu.pipeline_mode<synchronous>, transform_indices = @transform_2, window_bounds = array<i64: 32, 128>}, {pipeline_mode = #tpu.pipeline_mode<synchronous>, transform_indices = @transform_3, window_bounds = array<i64: 32, 32>}, {pipeline_mode = #tpu.pipeline_mode<synchronous>, transform_indices = @transform_4, window_bounds = array<i64: 32, 128>}, {pipeline_mode = #tpu.pipeline_mode<synchronous>, transform_indices = @transform_5, window_bounds = array<i64: 32, 32>}, {pipeline_mode = #tpu.pipeline_mode<synchronous>, transform_indices = @transform_6, window_bounds = array<i64: 32, 128>}, {pipeline_mode = #tpu.pipeline_mode<synchronous>, transform_indices = @transform_7, window_bounds = array<i64: 32, 32>}, {pipeline_mode = #tpu.pipeline_mode<synchronous>, transform_indices = @transform_8, window_bounds = array<i64: 32, 128>}, {pipeline_mode = #tpu.pipeline_mode<synchronous>, transform_indices = @transform_9, window_bounds = array<i64: 32, 16>}, {pipeline_mode = #tpu.pipeline_mode<synchronous>, transform_indices = @transform_10, window_bounds = array<i64: 32, 32>}, {pipeline_mode = #tpu.pipeline_mode<synchronous>, transform_indices = @transform_11, window_bounds = array<i64: 32, 128>}, {pipeline_mode = #tpu.pipeline_mode<synchronous>, transform_indices = @transform_12, window_bounds = array<i64: 8, 32>}, {pipeline_mode = #tpu.pipeline_mode<synchronous>, transform_indices = @transform_13, window_bounds = array<i64: 8, 128>}, {transform_indices = @transform_14, window_bounds = array<i64: 8, 128>}]} {
    %c0 = arith.constant 0 : index
    %c0_0 = arith.constant 0 : index
    %0 = vector.load %arg1[%c0, %c0_0] : memref<16x128xbf16, #tpu.memory_space<vmem>>, vector<16x128xbf16>
    %c0_1 = arith.constant 0 : index
    %c0_2 = arith.constant 0 : index
    %1 = vector.load %arg2[%c0_1, %c0_2] : memref<32x16xbf16, #tpu.memory_space<vmem>>, vector<32x16xbf16>
    %cst = arith.constant dense<0.000000e+00> : vector<32x128xf32>
    %2 = tpu.matmul %1, %0, %cst {dimension_numbers = #tpu.dot_dimension_numbers<[1], [0], [0], [1], [0, 0, 1, 1], [], []>} : vector<32x16xbf16>, vector<16x128xbf16>, vector<32x128xf32> -> vector<32x128xf32>
    %c0_3 = arith.constant 0 : index
    %c0_4 = arith.constant 0 : index
    %3 = vector.load %arg3[%c0_3, %c0_4] : memref<32x128xf32, #tpu.memory_space<vmem>>, vector<32x128xf32>
    %4 = arith.addf %2, %3 : vector<32x128xf32>
    %c0_5 = arith.constant 0 : index
    %c0_6 = arith.constant 0 : index
    %5 = vector.load %arg4[%c0_5, %c0_6] : memref<32x32xbf16, #tpu.memory_space<vmem>>, vector<32x32xbf16>
    %6 = arith.truncf %4 : vector<32x128xf32> to vector<32x128xbf16>
    %cst_7 = arith.constant dense<0.000000e+00> : vector<32x128xf32>
    %7 = tpu.matmul %5, %6, %cst_7 {dimension_numbers = #tpu.dot_dimension_numbers<[1], [0], [0], [1], [0, 0, 1, 1], [], []>} : vector<32x32xbf16>, vector<32x128xbf16>, vector<32x128xf32> -> vector<32x128xf32>
    %c0_8 = arith.constant 0 : index
    %c0_9 = arith.constant 0 : index
    %8 = vector.load %arg5[%c0_8, %c0_9] : memref<32x128xf32, #tpu.memory_space<vmem>>, vector<32x128xf32>
    %9 = arith.addf %7, %8 : vector<32x128xf32>
    %cst_10 = arith.constant 2.000000e+01 : f32
    %10 = vector.broadcast %cst_10 : f32 to vector<32x128xf32>
    %11 = arith.cmpf ogt, %9, %10 : vector<32x128xf32>
    %cst_11 = arith.constant 2.000000e+01 : f32
    %12 = vector.broadcast %cst_11 : f32 to vector<32x128xf32>
    %13 = arith.minimumf %9, %12 : vector<32x128xf32>
    %14 = math.exp %13 : vector<32x128xf32>
    %cst_12 = arith.constant 1.000000e+00 : f32
    %15 = vector.broadcast %cst_12 : f32 to vector<32x128xf32>
    %16 = arith.addf %15, %14 : vector<32x128xf32>
    %17 = math.log %16 : vector<32x128xf32>
    %18 = arith.select %11, %9, %17 : vector<32x128xi1>, vector<32x128xf32>
    %c0_13 = arith.constant 0 : index
    %c0_14 = arith.constant 0 : index
    %19 = vector.load %arg6[%c0_13, %c0_14] : memref<32x32xbf16, #tpu.memory_space<vmem>>, vector<32x32xbf16>
    %20 = arith.truncf %18 : vector<32x128xf32> to vector<32x128xbf16>
    %cst_15 = arith.constant dense<0.000000e+00> : vector<32x128xf32>
    %21 = tpu.matmul %19, %20, %cst_15 {dimension_numbers = #tpu.dot_dimension_numbers<[1], [0], [0], [1], [0, 0, 1, 1], [], []>} : vector<32x32xbf16>, vector<32x128xbf16>, vector<32x128xf32> -> vector<32x128xf32>
    %c0_16 = arith.constant 0 : index
    %c0_17 = arith.constant 0 : index
    %22 = vector.load %arg7[%c0_16, %c0_17] : memref<32x128xf32, #tpu.memory_space<vmem>>, vector<32x128xf32>
    %23 = arith.addf %21, %22 : vector<32x128xf32>
    %cst_18 = arith.constant 2.000000e+01 : f32
    %24 = vector.broadcast %cst_18 : f32 to vector<32x128xf32>
    %25 = arith.cmpf ogt, %23, %24 : vector<32x128xf32>
    %cst_19 = arith.constant 2.000000e+01 : f32
    %26 = vector.broadcast %cst_19 : f32 to vector<32x128xf32>
    %27 = arith.minimumf %23, %26 : vector<32x128xf32>
    %28 = math.exp %27 : vector<32x128xf32>
    %cst_20 = arith.constant 1.000000e+00 : f32
    %29 = vector.broadcast %cst_20 : f32 to vector<32x128xf32>
    %30 = arith.addf %29, %28 : vector<32x128xf32>
    %31 = math.log %30 : vector<32x128xf32>
    %32 = arith.select %25, %23, %31 : vector<32x128xi1>, vector<32x128xf32>
    %c0_21 = arith.constant 0 : index
    %c0_22 = arith.constant 0 : index
    %33 = vector.load %arg8[%c0_21, %c0_22] : memref<32x32xbf16, #tpu.memory_space<vmem>>, vector<32x32xbf16>
    %34 = arith.truncf %32 : vector<32x128xf32> to vector<32x128xbf16>
    %cst_23 = arith.constant dense<0.000000e+00> : vector<32x128xf32>
    %35 = tpu.matmul %33, %34, %cst_23 {dimension_numbers = #tpu.dot_dimension_numbers<[1], [0], [0], [1], [0, 0, 1, 1], [], []>} : vector<32x32xbf16>, vector<32x128xbf16>, vector<32x128xf32> -> vector<32x128xf32>
    %c0_24 = arith.constant 0 : index
    %c0_25 = arith.constant 0 : index
    %36 = vector.load %arg9[%c0_24, %c0_25] : memref<32x128xf32, #tpu.memory_space<vmem>>, vector<32x128xf32>
    %37 = arith.addf %35, %36 : vector<32x128xf32>
    %cst_26 = arith.constant 2.000000e+01 : f32
    %38 = vector.broadcast %cst_26 : f32 to vector<32x128xf32>
    %39 = arith.cmpf ogt, %37, %38 : vector<32x128xf32>
    %cst_27 = arith.constant 2.000000e+01 : f32
    %40 = vector.broadcast %cst_27 : f32 to vector<32x128xf32>
    %41 = arith.minimumf %37, %40 : vector<32x128xf32>
    %42 = math.exp %41 : vector<32x128xf32>
    %cst_28 = arith.constant 1.000000e+00 : f32
    %43 = vector.broadcast %cst_28 : f32 to vector<32x128xf32>
    %44 = arith.addf %43, %42 : vector<32x128xf32>
    %45 = math.log %44 : vector<32x128xf32>
    %46 = arith.select %39, %37, %45 : vector<32x128xi1>, vector<32x128xf32>
    %c0_29 = arith.constant 0 : index
    %c0_30 = arith.constant 0 : index
    %47 = vector.load %arg10[%c0_29, %c0_30] : memref<32x16xbf16, #tpu.memory_space<vmem>>, vector<32x16xbf16>
    %cst_31 = arith.constant dense<0.000000e+00> : vector<32x128xf32>
    %48 = tpu.matmul %47, %0, %cst_31 {dimension_numbers = #tpu.dot_dimension_numbers<[1], [0], [0], [1], [0, 0, 1, 1], [], []>} : vector<32x16xbf16>, vector<16x128xbf16>, vector<32x128xf32> -> vector<32x128xf32>
    %c0_32 = arith.constant 0 : index
    %c0_33 = arith.constant 0 : index
    %49 = vector.load %arg11[%c0_32, %c0_33] : memref<32x32xbf16, #tpu.memory_space<vmem>>, vector<32x32xbf16>
    %50 = arith.truncf %46 : vector<32x128xf32> to vector<32x128xbf16>
    %cst_34 = arith.constant dense<0.000000e+00> : vector<32x128xf32>
    %51 = tpu.matmul %49, %50, %cst_34 {dimension_numbers = #tpu.dot_dimension_numbers<[1], [0], [0], [1], [0, 0, 1, 1], [], []>} : vector<32x32xbf16>, vector<32x128xbf16>, vector<32x128xf32> -> vector<32x128xf32>
    %52 = arith.addf %48, %51 : vector<32x128xf32>
    %c0_35 = arith.constant 0 : index
    %c0_36 = arith.constant 0 : index
    %53 = vector.load %arg12[%c0_35, %c0_36] : memref<32x128xf32, #tpu.memory_space<vmem>>, vector<32x128xf32>
    %54 = arith.addf %52, %53 : vector<32x128xf32>
    %cst_37 = arith.constant 2.000000e+01 : f32
    %55 = vector.broadcast %cst_37 : f32 to vector<32x128xf32>
    %56 = arith.cmpf ogt, %54, %55 : vector<32x128xf32>
    %cst_38 = arith.constant 2.000000e+01 : f32
    %57 = vector.broadcast %cst_38 : f32 to vector<32x128xf32>
    %58 = arith.minimumf %54, %57 : vector<32x128xf32>
    %59 = math.exp %58 : vector<32x128xf32>
    %cst_39 = arith.constant 1.000000e+00 : f32
    %60 = vector.broadcast %cst_39 : f32 to vector<32x128xf32>
    %61 = arith.addf %60, %59 : vector<32x128xf32>
    %62 = math.log %61 : vector<32x128xf32>
    %63 = arith.select %56, %54, %62 : vector<32x128xi1>, vector<32x128xf32>
    %c0_40 = arith.constant 0 : index
    %c0_41 = arith.constant 0 : index
    %64 = vector.load %arg13[%c0_40, %c0_41] : memref<8x32xbf16, #tpu.memory_space<vmem>>, vector<8x32xbf16>
    %65 = arith.truncf %63 : vector<32x128xf32> to vector<32x128xbf16>
    %cst_42 = arith.constant dense<0.000000e+00> : vector<8x128xf32>
    %66 = tpu.matmul %64, %65, %cst_42 {dimension_numbers = #tpu.dot_dimension_numbers<[1], [0], [0], [1], [0, 0, 1, 1], [], []>} : vector<8x32xbf16>, vector<32x128xbf16>, vector<8x128xf32> -> vector<8x128xf32>
    %c0_43 = arith.constant 0 : index
    %c0_44 = arith.constant 0 : index
    %67 = vector.load %arg14[%c0_43, %c0_44] : memref<8x128xf32, #tpu.memory_space<vmem>>, vector<8x128xf32>
    %68 = arith.addf %66, %67 : vector<8x128xf32>
    %c0_45 = arith.constant 0 : index
    %c0_46 = arith.constant 0 : index
    %69 = vector.load %arg15[%c0_45, %c0_46] : memref<8x128xf32, #tpu.memory_space<vmem>>, vector<8x128xf32>
    tpu.vector_store %arg15[%c0_45, %c0_46], %68 {strides = array<i32>} : memref<8x128xf32, #tpu.memory_space<vmem>>, vector<8x128xf32>,
    return
  }
  func.func @transform_0(%arg0: i32) -> (i32, i32) {
    %c0_i32 = arith.constant 0 : i32
    %c0_i32_0 = arith.constant 0 : i32
    return %c0_i32, %arg0 : i32, i32
  }
  func.func @transform_1(%arg0: i32) -> (i32, i32) {
    %c0_i32 = arith.constant 0 : i32
    %c0_i32_0 = arith.constant 0 : i32
    %c0_i32_1 = arith.constant 0 : i32
    return %c0_i32, %c0_i32_0 : i32, i32
  }
  func.func @transform_2(%arg0: i32) -> (i32, i32) {
    %c0_i32 = arith.constant 0 : i32
    %c0_i32_0 = arith.constant 0 : i32
    %c0_i32_1 = arith.constant 0 : i32
    return %c0_i32, %c0_i32_0 : i32, i32
  }
  func.func @transform_3(%arg0: i32) -> (i32, i32) {
    %c0_i32 = arith.constant 0 : i32
    %c0_i32_0 = arith.constant 0 : i32
    %c0_i32_1 = arith.constant 0 : i32
    return %c0_i32, %c0_i32_0 : i32, i32
  }
  func.func @transform_4(%arg0: i32) -> (i32, i32) {
    %c0_i32 = arith.constant 0 : i32
    %c0_i32_0 = arith.constant 0 : i32
    %c0_i32_1 = arith.constant 0 : i32
    return %c0_i32, %c0_i32_0 : i32, i32
  }
  func.func @transform_5(%arg0: i32) -> (i32, i32) {
    %c0_i32 = arith.constant 0 : i32
    %c0_i32_0 = arith.constant 0 : i32
    %c0_i32_1 = arith.constant 0 : i32
    return %c0_i32, %c0_i32_0 : i32, i32
  }
  func.func @transform_6(%arg0: i32) -> (i32, i32) {
    %c0_i32 = arith.constant 0 : i32
    %c0_i32_0 = arith.constant 0 : i32
    %c0_i32_1 = arith.constant 0 : i32
    return %c0_i32, %c0_i32_0 : i32, i32
  }
  func.func @transform_7(%arg0: i32) -> (i32, i32) {
    %c0_i32 = arith.constant 0 : i32
    %c0_i32_0 = arith.constant 0 : i32
    %c0_i32_1 = arith.constant 0 : i32
    return %c0_i32, %c0_i32_0 : i32, i32
  }
  func.func @transform_8(%arg0: i32) -> (i32, i32) {
    %c0_i32 = arith.constant 0 : i32
    %c0_i32_0 = arith.constant 0 : i32
    %c0_i32_1 = arith.constant 0 : i32
    return %c0_i32, %c0_i32_0 : i32, i32
  }
  func.func @transform_9(%arg0: i32) -> (i32, i32) {
    %c0_i32 = arith.constant 0 : i32
    %c0_i32_0 = arith.constant 0 : i32
    %c0_i32_1 = arith.constant 0 : i32
    return %c0_i32, %c0_i32_0 : i32, i32
  }
  func.func @transform_10(%arg0: i32) -> (i32, i32) {
    %c0_i32 = arith.constant 0 : i32
    %c0_i32_0 = arith.constant 0 : i32
    %c0_i32_1 = arith.constant 0 : i32
    return %c0_i32, %c0_i32_0 : i32, i32
  }
  func.func @transform_11(%arg0: i32) -> (i32, i32) {
    %c0_i32 = arith.constant 0 : i32
    %c0_i32_0 = arith.constant 0 : i32
    %c0_i32_1 = arith.constant 0 : i32
    return %c0_i32, %c0_i32_0 : i32, i32
  }
  func.func @transform_12(%arg0: i32) -> (i32, i32) {
    %c0_i32 = arith.constant 0 : i32
    %c0_i32_0 = arith.constant 0 : i32
    %c0_i32_1 = arith.constant 0 : i32
    return %c0_i32, %c0_i32_0 : i32, i32
  }
  func.func @transform_13(%arg0: i32) -> (i32, i32) {
    %c0_i32 = arith.constant 0 : i32
    %c0_i32_0 = arith.constant 0 : i32
    %c0_i32_1 = arith.constant 0 : i32
    return %c0_i32, %c0_i32_0 : i32, i32
  }
  func.func @transform_14(%arg0: i32) -> (i32, i32) {
    %c0_i32 = arith.constant 0 : i32
    %c0_i32_0 = arith.constant 0 : i32
    return %c0_i32, %arg0 : i32, i32
  }
}

</mosaic_0001>

<llo_original>
// kernel: tpu_custom_call.1
$region0: #{tpu_custom_call.1}
  #allocation0 [shape = 'u32[]', space=smem, size = 0x4, offset = 0x4, fixed_abs, tag = 'smem constant byte address 0x4 - core index']
  #allocation1 [shape = 'u32[72,128]{1,0:T(1,128)}', space=vmem, size = 0x9000, scoped, tag = 'internal scratch']
  %s0 = inlined_call_operand.vmem [shape: bf16[16,8], index: 0, kind: input, shape index: {}]
  %s1 = inlined_call_operand.vmem [shape: bf16[32,16], index: 1, kind: input, shape index: {}]
  %s2 = inlined_call_operand.vmem [shape: f32[32,128], index: 2, kind: input, shape index: {}]
  %s3 = inlined_call_operand.hbm [shape: bf16[32,32], index: 3, kind: input, shape index: {}]
  %s4 = inlined_call_operand.hbm [shape: f32[32,128], index: 4, kind: input, shape index: {}]
  %s5 = inlined_call_operand.hbm [shape: bf16[32,32], index: 5, kind: input, shape index: {}]
  %s6 = inlined_call_operand.vmem [shape: f32[32,128], index: 6, kind: input, shape index: {}]
  %s7 = inlined_call_operand.hbm [shape: bf16[32,32], index: 7, kind: input, shape index: {}]
  %s8 = inlined_call_operand.hbm [shape: f32[32,128], index: 8, kind: input, shape index: {}]
  %s9 = inlined_call_operand.vmem [shape: bf16[32,16], index: 9, kind: input, shape index: {}]
  %s10 = inlined_call_operand.hbm [shape: bf16[32,32], index: 10, kind: input, shape index: {}]
  %s11 = inlined_call_operand.hbm [shape: f32[32,128], index: 11, kind: input, shape index: {}]
  %s12 = inlined_call_operand.hbm [shape: bf16[8,32], index: 12, kind: input, shape index: {}]
  %s13 = inlined_call_operand.vmem [shape: f32[8,128], index: 13, kind: input, shape index: {}]
  %s14 = inlined_call_operand.hbm [shape: f32[8,8], index: 14, kind: output, shape index: {}]
  %s15 = sld [smem:[#allocation0]]
  $region98: #{tpu_custom_call.1} parent=0
    _
  %s17 = ssub.s32 1, %s15
  %s18 = scalar_select 0, %s17, %s15
  $region1: #{tpu_custom_call.1} parent=0
    #allocation2 [shape = 'u8[8192]{0}', space=vmem, size = 0x2000, scoped, tag = 'input window, operand 3, single buffered']
    #allocation3 [shape = 's32[1]{0}', space=sflag, size = 0x4, scoped, tag = 'scoped memory for tpu_custom_call.1']
    #allocation4 [shape = 's32[1]{0}', space=sflag, size = 0x4, scoped, tag = 'scoped memory for tpu_custom_call.1']
    #allocation5 [shape = 'u8[16384]{0}', space=vmem, size = 0x4000, scoped, tag = 'input window, operand 4, single buffered']
    #allocation6 [shape = 's32[1]{0}', space=sflag, size = 0x4, scoped, tag = 'scoped memory for tpu_custom_call.1']
    #allocation7 [shape = 'u8[8192]{0}', space=vmem, size = 0x2000, scoped, tag = 'input window, operand 5, single buffered']
    #allocation8 [shape = 'u8[8192]{0}', space=vmem, size = 0x2000, scoped, tag = 'input window, operand 7, single buffered']
    #allocation9 [shape = 's32[1]{0}', space=sflag, size = 0x4, scoped, tag = 'scoped memory for tpu_custom_call.1']
    #allocation10 [shape = 'u8[16384]{0}', space=vmem, size = 0x4000, scoped, tag = 'input window, operand 8, single buffered']
    #allocation11 [shape = 'u8[8192]{0}', space=vmem, size = 0x2000, scoped, tag = 'input window, operand 10, single buffered']
    #allocation12 [shape = 's32[1]{0}', space=sflag, size = 0x4, scoped, tag = 'scoped memory for tpu_custom_call.1']
    #allocation13 [shape = 'u8[16384]{0}', space=vmem, size = 0x4000, scoped, tag = 'input window, operand 11, single buffered']
    #allocation14 [shape = 'u8[2048]{0}', space=vmem, size = 0x800, scoped, tag = 'input window, operand 12, single buffered']
    #allocation15 [shape = 's32[1]{0}', space=sflag, size = 0x4, scoped, tag = 'scoped memory for tpu_custom_call.1']
    #allocation16 [shape = 'u8[4096]{0}', space=vmem, size = 0x1000, scoped, tag = 'output window, operand 0, single buffered']
    %19 = vsyncpa [#allocation3], 0
    %20 = vsyncpa [#allocation6], 0
    %21 = vsyncpa [#allocation9], 0
    %22 = vsyncpa [#allocation12], 0
    %23 = vsyncpa [#allocation15], 0
    %24 = vsyncpa [#allocation4], 0
    // Predicated region
    $region2: #{tpu_custom_call.1} parent=1 // pred_check
      _
    $region3: #{tpu_custom_call.1} parent=1 // pred_check_branch
      %26 = sbr.rel (0) target = $region5
    $region4: #{tpu_custom_call.1} parent=1 // pred_region
      _
    $region5: #{tpu_custom_call.1} parent=1 // pred_fallthru
      _
    // Predicated region
    $region6: #{tpu_custom_call.1} parent=1 // pred_check
      _
    $region7: #{tpu_custom_call.1} parent=1 // pred_check_branch
      %28 = sbr.rel (0) target = $region9
    $region8: #{tpu_custom_call.1} parent=1 // pred_region
      _
    $region9: #{tpu_custom_call.1} parent=1 // pred_fallthru
      _
    // Predicated region
    $region10: #{tpu_custom_call.1} parent=1 // pred_check
      _
    $region11: #{tpu_custom_call.1} parent=1 // pred_check_branch
      %30 = sbr.rel (0) target = $region13
    $region12: #{tpu_custom_call.1} parent=1 // pred_region
      _
    $region13: #{tpu_custom_call.1} parent=1 // pred_fallthru
      _
    // Predicated region
    $region14: #{tpu_custom_call.1} parent=1 // pred_check
      _
    $region15: #{tpu_custom_call.1} parent=1 // pred_check_branch
      %32 = sbr.rel (0) target = $region17
    $region16: #{tpu_custom_call.1} parent=1 // pred_region
      %34 = vsyncadd [#allocation3], 0
      %s35 = sshll.u32 %s3, 4
      %s36 = int_to_ptr.hbm [resolvable:$true] %s35
      %s37 = sshll.u32 [#allocation2], 4
      %s38 = int_to_ptr.vmem [resolvable:$true] %s37
      %43 = dma.hbm_to_vmem [thread:$0]  %s36, 256, %s38, [#allocation3], 64, 64, 4
    $region17: #{tpu_custom_call.1} parent=1 // pred_fallthru
      _
    // Predicated region
    $region18: #{tpu_custom_call.1} parent=1 // pred_check
      _
    $region19: #{tpu_custom_call.1} parent=1 // pred_check_branch
      %45 = sbr.rel (0) target = $region21
    $region20: #{tpu_custom_call.1} parent=1 // pred_region
      %47 = vsyncadd [#allocation6], 0
      %s48 = sshll.u32 %s4, 4
      %s49 = int_to_ptr.hbm [resolvable:$true] %s48
      %s50 = sshll.u32 [#allocation5], 4
      %s51 = int_to_ptr.vmem [resolvable:$true] %s50
      %56 = dma.hbm_to_vmem [thread:$0]  %s49, 512, %s51, [#allocation6], 128, 128, 8
    $region21: #{tpu_custom_call.1} parent=1 // pred_fallthru
      _
    // Predicated region
    $region22: #{tpu_custom_call.1} parent=1 // pred_check
      _
    $region23: #{tpu_custom_call.1} parent=1 // pred_check_branch
      %58 = sbr.rel (0) target = $region25
    $region24: #{tpu_custom_call.1} parent=1 // pred_region
      %60 = vsyncadd [#allocation6], 0
      %s61 = sshll.u32 %s5, 4
      %s62 = int_to_ptr.hbm [resolvable:$true] %s61
      %s63 = sshll.u32 [#allocation7], 4
      %s64 = int_to_ptr.vmem [resolvable:$true] %s63
      %69 = dma.hbm_to_vmem [thread:$0]  %s62, 256, %s64, [#allocation6], 64, 64, 4
    $region25: #{tpu_custom_call.1} parent=1 // pred_fallthru
      _
    // Predicated region
    $region26: #{tpu_custom_call.1} parent=1 // pred_check
      _
    $region27: #{tpu_custom_call.1} parent=1 // pred_check_branch
      %71 = sbr.rel (0) target = $region29
    $region28: #{tpu_custom_call.1} parent=1 // pred_region
      _
    $region29: #{tpu_custom_call.1} parent=1 // pred_fallthru
      _
    // Predicated region
    $region30: #{tpu_custom_call.1} parent=1 // pred_check
      _
    $region31: #{tpu_custom_call.1} parent=1 // pred_check_branch
      %73 = sbr.rel (0) target = $region33
    $region32: #{tpu_custom_call.1} parent=1 // pred_region
      %75 = vsyncadd [#allocation9], 0
      %s76 = sshll.u32 %s7, 4
      %s77 = int_to_ptr.hbm [resolvable:$true] %s76
      %s78 = sshll.u32 [#allocation8], 4
      %s79 = int_to_ptr.vmem [resolvable:$true] %s78
      %84 = dma.hbm_to_vmem [thread:$0]  %s77, 256, %s79, [#allocation9], 64, 64, 4
    $region33: #{tpu_custom_call.1} parent=1 // pred_fallthru
      _
    // Predicated region
    $region34: #{tpu_custom_call.1} parent=1 // pred_check
      _
    $region35: #{tpu_custom_call.1} parent=1 // pred_check_branch
      %86 = sbr.rel (0) target = $region37
    $region36: #{tpu_custom_call.1} parent=1 // pred_region
      %88 = vsyncadd [#allocation9], 0
      %s89 = sshll.u32 %s8, 4
      %s90 = int_to_ptr.hbm [resolvable:$true] %s89
      %s91 = sshll.u32 [#allocation10], 4
      %s92 = int_to_ptr.vmem [resolvable:$true] %s91
      %97 = dma.hbm_to_vmem [thread:$0]  %s90, 512, %s92, [#allocation9], 128, 128, 8
    $region37: #{tpu_custom_call.1} parent=1 // pred_fallthru
      _
    // Predicated region
    $region38: #{tpu_custom_call.1} parent=1 // pred_check
      _
    $region39: #{tpu_custom_call.1} parent=1 // pred_check_branch
      %99 = sbr.rel (0) target = $region41
    $region40: #{tpu_custom_call.1} parent=1 // pred_region
      _
    $region41: #{tpu_custom_call.1} parent=1 // pred_fallthru
      _
    // Predicated region
    $region42: #{tpu_custom_call.1} parent=1 // pred_check
      _
    $region43: #{tpu_custom_call.1} parent=1 // pred_check_branch
      %101 = sbr.rel (0) target = $region45
    $region44: #{tpu_custom_call.1} parent=1 // pred_region
      %103 = vsyncadd [#allocation12], 0
      %s104 = sshll.u32 %s10, 4
      %s105 = int_to_ptr.hbm [resolvable:$true] %s104
      %s106 = sshll.u32 [#allocation11], 4
      %s107 = int_to_ptr.vmem [resolvable:$true] %s106
      %112 = dma.hbm_to_vmem [thread:$0]  %s105, 256, %s107, [#allocation12], 64, 64, 4
    $region45: #{tpu_custom_call.1} parent=1 // pred_fallthru
      _
    // Predicated region
    $region46: #{tpu_custom_call.1} parent=1 // pred_check
      _
    $region47: #{tpu_custom_call.1} parent=1 // pred_check_branch
      %114 = sbr.rel (0) target = $region49
    $region48: #{tpu_custom_call.1} parent=1 // pred_region
      %116 = vsyncadd [#allocation12], 0
      %s117 = sshll.u32 %s11, 4
      %s118 = int_to_ptr.hbm [resolvable:$true] %s117
      %s119 = sshll.u32 [#allocation13], 4
      %s120 = int_to_ptr.vmem [resolvable:$true] %s119
      %125 = dma.hbm_to_vmem [thread:$0]  %s118, 512, %s120, [#allocation12], 128, 128, 8
    $region49: #{tpu_custom_call.1} parent=1 // pred_fallthru
      _
    // Predicated region
    $region50: #{tpu_custom_call.1} parent=1 // pred_check
      _
    $region51: #{tpu_custom_call.1} parent=1 // pred_check_branch
      %127 = sbr.rel (0) target = $region53
    $region52: #{tpu_custom_call.1} parent=1 // pred_region
      %129 = vsyncadd [#allocation15], 0
      %s131 = sshll.u32 %s12, 4
      %s132 = int_to_ptr.hbm [resolvable:$true] %s131
      %s133 = sshll.u32 [#allocation14], 4
      %s134 = int_to_ptr.vmem [resolvable:$true] %s133
      %136 = dma.hbm_to_vmem [thread:$0]  %s132, 64, %s134, [#allocation15]
    $region53: #{tpu_custom_call.1} parent=1 // pred_fallthru
      _
    // Predicated region
    $region54: #{tpu_custom_call.1} parent=1 // pred_check
      _
    $region55: #{tpu_custom_call.1} parent=1 // pred_check_branch
      %138 = sbr.rel (0) target = $region57
    $region56: #{tpu_custom_call.1} parent=1 // pred_region
      _
    $region57: #{tpu_custom_call.1} parent=1 // pred_fallthru
      _
    // Predicated region
    $region58: #{tpu_custom_call.1} parent=1 // pred_check
      _
    $region59: #{tpu_custom_call.1} parent=1 // pred_check_branch
      %140 = sbr.rel (0) target = $region61
    $region60: #{tpu_custom_call.1} parent=1 // pred_region
      %142 = dma.done [#allocation3], 256
    $region61: #{tpu_custom_call.1} parent=1 // pred_fallthru
      _
    // Predicated region
    $region62: #{tpu_custom_call.1} parent=1 // pred_check
      _
    $region63: #{tpu_custom_call.1} parent=1 // pred_check_branch
      %144 = sbr.rel (0) target = $region65
    $region64: #{tpu_custom_call.1} parent=1 // pred_region
      %146 = dma.done [#allocation6], 512
    $region65: #{tpu_custom_call.1} parent=1 // pred_fallthru
      _
    // Predicated region
    $region66: #{tpu_custom_call.1} parent=1 // pred_check
      _
    $region67: #{tpu_custom_call.1} parent=1 // pred_check_branch
      %148 = sbr.rel (0) target = $region69
    $region68: #{tpu_custom_call.1} parent=1 // pred_region
      %150 = dma.done [#allocation6], 256
    $region69: #{tpu_custom_call.1} parent=1 // pred_fallthru
      _
    // Predicated region
    $region70: #{tpu_custom_call.1} parent=1 // pred_check
      _
    $region71: #{tpu_custom_call.1} parent=1 // pred_check_branch
      %152 = sbr.rel (0) target = $region73
    $region72: #{tpu_custom_call.1} parent=1 // pred_region
      %154 = dma.done [#allocation9], 256
    $region73: #{tpu_custom_call.1} parent=1 // pred_fallthru
      _
    // Predicated region
    $region74: #{tpu_custom_call.1} parent=1 // pred_check
      _
    $region75: #{tpu_custom_call.1} parent=1 // pred_check_branch
      %156 = sbr.rel (0) target = $region77
    $region76: #{tpu_custom_call.1} parent=1 // pred_region
      %158 = dma.done [#allocation9], 512
    $region77: #{tpu_custom_call.1} parent=1 // pred_fallthru
      _
    // Predicated region
    $region78: #{tpu_custom_call.1} parent=1 // pred_check
      _
    $region79: #{tpu_custom_call.1} parent=1 // pred_check_branch
      %160 = sbr.rel (0) target = $region81
    $region80: #{tpu_custom_call.1} parent=1 // pred_region
      %162 = dma.done [#allocation12], 256
    $region81: #{tpu_custom_call.1} parent=1 // pred_fallthru
      _
    // Predicated region
    $region82: #{tpu_custom_call.1} parent=1 // pred_check
      _
    $region83: #{tpu_custom_call.1} parent=1 // pred_check_branch
      %164 = sbr.rel (0) target = $region85
    $region84: #{tpu_custom_call.1} parent=1 // pred_region
      %166 = dma.done [#allocation12], 512
    $region85: #{tpu_custom_call.1} parent=1 // pred_fallthru
      _
    // Predicated region
    $region86: #{tpu_custom_call.1} parent=1 // pred_check
      _
    $region87: #{tpu_custom_call.1} parent=1 // pred_check_branch
      %168 = sbr.rel (0) target = $region89
    $region88: #{tpu_custom_call.1} parent=1 // pred_region
      %170 = dma.done [#allocation15], 64
    $region89: #{tpu_custom_call.1} parent=1 // pred_fallthru
      _
    %v172 = vld [vmem:[%s0] sm:$0xf]
    %v173 = vld [vmem:[%s0 + $0x4] sm:$0xf]
    %v174 = vld [vmem:[%s1] sm:$0xf]
    %v175 = vld [vmem:[%s1 + $0x4] sm:$0xf]
    %v176 = vld [vmem:[%s1 + $0x8] sm:$0xf]
    %v177 = vld [vmem:[%s1 + $0xc] sm:$0xf]
    %v178 = vld [vmem:[%s2] sm:$0xff]
    %v179 = vld [vmem:[%s2 + $0x8] sm:$0xff]
    %v180 = vld [vmem:[%s2 + $0x10] sm:$0xff]
    %v181 = vld [vmem:[%s2 + $0x18] sm:$0xff]
    %v186 = vunpack.c.l.b16 %v174
    %v187 = vunpack.c.l.b16 %v175
    %v188 = vunpack.c.l.b16 %v176
    %v189 = vunpack.c.l.b16 %v177
    %v190 = vpack.c.b16 %v187, %v186
    %v191 = vpack.c.b16 %v189, %v188
    %v194 = vunpack.c.l.b16 %v172
    %v195 = vunpack.c.l.b16 %v173
    %v196 = vpack.c.b16 %v195, %v194
    %vm198 = vcmask 130048
    %v200 = vsel %vm198, %v190, 0
    %v203 = vsel %vm198, %v191, 0
    %205 = vmatpush.bf16.msra.mxu0 0
    %206 = vmatpush.bf16.msra.mxu0 0
    %207 = vmatpush.bf16.msra.mxu0 0
    %208 = vmatpush.bf16.msra.mxu0 0
    %209 = vmatpush.bf16.msra.mxu0 0
    %210 = vmatpush.bf16.msra.mxu0 0
    %211 = vmatpush.bf16.msra.mxu0 0
    %212 = vmatpush.bf16.msra.mxu0 %v196
    %213 = vmatmul.bf16.gmra.mxu0 %v200
    %v214 = vpop.f32.mrf.mxu0
    %v215 = vadd.f32 %v178, %v214
    %v216 = vpop.f32.mrf.mxu0
    %v217 = vadd.f32 %v179, %v216
    %218 = vmatmul.bf16.gmra.mxu0 %v203
    %v219 = vpop.f32.mrf.mxu0
    %v220 = vadd.f32 %v180, %v219
    %v221 = vpop.f32.mrf.mxu0
    %v222 = vadd.f32 %v181, %v221
    %223 = vdwg.mxu0
    %v224 = vld [vmem:[#allocation2] sm:$0xf]
    %v225 = vld [vmem:[#allocation2 + $0x4] sm:$0xf]
    %v226 = vld [vmem:[#allocation2 + $0x8] sm:$0xf]
    %v227 = vld [vmem:[#allocation2 + $0xc] sm:$0xf]
    %v228 = vpack.c.bf16 %v217, %v215
    %v229 = vpack.c.bf16 %v222, %v220
    %v230 = vld [vmem:[#allocation5] sm:$0xff]
    %v231 = vld [vmem:[#allocation5 + $0x8] sm:$0xff]
    %v232 = vld [vmem:[#allocation5 + $0x10] sm:$0xff]
    %v233 = vld [vmem:[#allocation5 + $0x18] sm:$0xff]
    %v238 = vunpack.c.l.b16 %v224
    %v239 = vunpack.c.l.b16 %v225
    %v240 = vunpack.c.l.b16 %v226
    %v241 = vunpack.c.l.b16 %v227
    %v242 = vpack.c.b16 %v239, %v238
    %v243 = vpack.c.b16 %v241, %v240
    %vm244 = vcmask 261120
    %v246 = vsel %vm244, %v242, 0
    %v249 = vsel %vm244, %v243, 0
    %251 = vmatpush.bf16.msra.mxu0 0
    %252 = vmatpush.bf16.msra.mxu0 0
    %253 = vmatpush.bf16.msra.mxu0 0
    %254 = vmatpush.bf16.msra.mxu0 0
    %255 = vmatpush.bf16.msra.mxu0 0
    %256 = vmatpush.bf16.msra.mxu0 0
    %257 = vmatpush.bf16.msra.mxu0 %v229
    %258 = vmatpush.bf16.msra.mxu0 %v228
    %259 = vmatmul.bf16.gmra.mxu0 %v246
    %v260 = vpop.f32.mrf.mxu0
    %v261 = vadd.f32 %v230, %v260
    %v262 = vpop.f32.mrf.mxu0
    %v263 = vadd.f32 %v231, %v262
    %264 = vmatmul.bf16.gmra.mxu0 %v249
    %v265 = vpop.f32.mrf.mxu0
    %v266 = vadd.f32 %v232, %v265
    %v267 = vpop.f32.mrf.mxu0
    %v268 = vadd.f32 %v233, %v267
    %269 = vdwg.mxu0
    %vm270 = vcmp.gt.f32.partialorder %v261, 20.0
    %vm271 = vcmp.gt.f32.partialorder %v263, 20.0
    %vm272 = vcmp.gt.f32.partialorder %v266, 20.0
    %vm273 = vcmp.gt.f32.partialorder %v268, 20.0
    %v274 = vmin.f32 %v261, 20.0
    %v275 = vmin.f32 %v263, 20.0
    %v276 = vmin.f32 %v266, 20.0
    %v277 = vmin.f32 %v268, 20.0
    %v278 = vmul.f32 %v274, 1.442695
    %v279 = vpow.pop %v278
    %v280 = vmul.f32 %v275, 1.442695
    %v281 = vpow.pop %v280
    %v282 = vmul.f32 %v276, 1.442695
    %v283 = vpow.pop %v282
    %v284 = vmul.f32 %v277, 1.442695
    %v285 = vpow.pop %v284
    %v286 = vadd.f32 %v279, 1.0
    %v287 = vadd.f32 %v281, 1.0
    %v288 = vadd.f32 %v283, 1.0
    %v289 = vadd.f32 %v285, 1.0
    %v290 = vlog2.pop %v286
    %v291 = vmul.f32 %v290, 0.6931472
    %v292 = vlog2.pop %v287
    %v293 = vmul.f32 %v292, 0.6931472
    %v294 = vlog2.pop %v288
    %v295 = vmul.f32 %v294, 0.6931472
    %v296 = vlog2.pop %v289
    %v297 = vmul.f32 %v296, 0.6931472
    %v298 = vsel %vm270, %v261, %v291
    %v299 = vsel %vm271, %v263, %v293
    %v300 = vsel %vm272, %v266, %v295
    %v301 = vsel %vm273, %v268, %v297
    %v302 = vld [vmem:[#allocation7] sm:$0xf]
    %v303 = vld [vmem:[#allocation7 + $0x4] sm:$0xf]
    %v304 = vld [vmem:[#allocation7 + $0x8] sm:$0xf]
    %v305 = vld [vmem:[#allocation7 + $0xc] sm:$0xf]
    %v306 = vpack.c.bf16 %v299, %v298
    %v307 = vpack.c.bf16 %v301, %v300
    %v308 = vld [vmem:[%s6] sm:$0xff]
    %v309 = vld [vmem:[%s6 + $0x8] sm:$0xff]
    %v310 = vld [vmem:[%s6 + $0x10] sm:$0xff]
    %v311 = vld [vmem:[%s6 + $0x18] sm:$0xff]
    %v316 = vunpack.c.l.b16 %v302
    %v317 = vunpack.c.l.b16 %v303
    %v318 = vunpack.c.l.b16 %v304
    %v319 = vunpack.c.l.b16 %v305
    %v320 = vpack.c.b16 %v317, %v316
    %v321 = vpack.c.b16 %v319, %v318
    %v323 = vsel %vm244, %v320, 0
    %v326 = vsel %vm244, %v321, 0
    %328 = vmatpush.bf16.msra.mxu0 0
    %329 = vmatpush.bf16.msra.mxu0 0
    %330 = vmatpush.bf16.msra.mxu0 0
    %331 = vmatpush.bf16.msra.mxu0 0
    %332 = vmatpush.bf16.msra.mxu0 0
    %333 = vmatpush.bf16.msra.mxu0 0
    %334 = vmatpush.bf16.msra.mxu0 %v307
    %335 = vmatpush.bf16.msra.mxu0 %v306
    %336 = vmatmul.bf16.gmra.mxu0 %v323
    %v337 = vpop.f32.mrf.mxu0
    %v338 = vadd.f32 %v308, %v337
    %v339 = vpop.f32.mrf.mxu0
    %v340 = vadd.f32 %v309, %v339
    %341 = vmatmul.bf16.gmra.mxu0 %v326
    %v342 = vpop.f32.mrf.mxu0
    %v343 = vadd.f32 %v310, %v342
    %v344 = vpop.f32.mrf.mxu0
    %v345 = vadd.f32 %v311, %v344
    %346 = vdwg.mxu0
    %vm347 = vcmp.gt.f32.partialorder %v338, 20.0
    %vm348 = vcmp.gt.f32.partialorder %v340, 20.0
    %vm349 = vcmp.gt.f32.partialorder %v343, 20.0
    %vm350 = vcmp.gt.f32.partialorder %v345, 20.0
    %v351 = vmin.f32 %v338, 20.0
    %v352 = vmin.f32 %v340, 20.0
    %v353 = vmin.f32 %v343, 20.0
    %v354 = vmin.f32 %v345, 20.0
    %v355 = vmul.f32 %v351, 1.442695
    %v356 = vpow.pop %v355
    %v357 = vmul.f32 %v352, 1.442695
    %v358 = vpow.pop %v357
    %v359 = vmul.f32 %v353, 1.442695
    %v360 = vpow.pop %v359
    %v361 = vmul.f32 %v354, 1.442695
    %v362 = vpow.pop %v361
    %v363 = vadd.f32 %v356, 1.0
    %v364 = vadd.f32 %v358, 1.0
    %v365 = vadd.f32 %v360, 1.0
    %v366 = vadd.f32 %v362, 1.0
    %v367 = vlog2.pop %v363
    %v368 = vmul.f32 %v367, 0.6931472
    %v369 = vlog2.pop %v364
    %v370 = vmul.f32 %v369, 0.6931472
    %v371 = vlog2.pop %v365
    %v372 = vmul.f32 %v371, 0.6931472
    %v373 = vlog2.pop %v366
    %v374 = vmul.f32 %v373, 0.6931472
    %v375 = vsel %vm347, %v338, %v368
    %v376 = vsel %vm348, %v340, %v370
    %v377 = vsel %vm349, %v343, %v372
    %v378 = vsel %vm350, %v345, %v374
    %v379 = vld [vmem:[#allocation8] sm:$0xf]
    %v380 = vld [vmem:[#allocation8 + $0x4] sm:$0xf]
    %v381 = vld [vmem:[#allocation8 + $0x8] sm:$0xf]
    %v382 = vld [vmem:[#allocation8 + $0xc] sm:$0xf]
    %v383 = vpack.c.bf16 %v376, %v375
    %v384 = vpack.c.bf16 %v378, %v377
    %v385 = vld [vmem:[#allocation10] sm:$0xff]
    %v386 = vld [vmem:[#allocation10 + $0x8] sm:$0xff]
    %v387 = vld [vmem:[#allocation10 + $0x10] sm:$0xff]
    %v388 = vld [vmem:[#allocation10 + $0x18] sm:$0xff]
    %v393 = vunpack.c.l.b16 %v379
    %v394 = vunpack.c.l.b16 %v380
    %v395 = vunpack.c.l.b16 %v381
    %v396 = vunpack.c.l.b16 %v382
    %v397 = vpack.c.b16 %v394, %v393
    %v398 = vpack.c.b16 %v396, %v395
    %v400 = vsel %vm244, %v397, 0
    %v403 = vsel %vm244, %v398, 0
    %405 = vmatpush.bf16.msra.mxu0 0
    %406 = vmatpush.bf16.msra.mxu0 0
    %407 = vmatpush.bf16.msra.mxu0 0
    %408 = vmatpush.bf16.msra.mxu0 0
    %409 = vmatpush.bf16.msra.mxu0 0
    %410 = vmatpush.bf16.msra.mxu0 0
    %411 = vmatpush.bf16.msra.mxu0 %v384
    %412 = vmatpush.bf16.msra.mxu0 %v383
    %413 = vmatmul.bf16.gmra.mxu0 %v400
    %v414 = vpop.f32.mrf.mxu0
    %v415 = vadd.f32 %v385, %v414
    %v416 = vpop.f32.mrf.mxu0
    %v417 = vadd.f32 %v386, %v416
    %418 = vmatmul.bf16.gmra.mxu0 %v403
    %v419 = vpop.f32.mrf.mxu0
    %v420 = vadd.f32 %v387, %v419
    %v421 = vpop.f32.mrf.mxu0
    %v422 = vadd.f32 %v388, %v421
    %423 = vdwg.mxu0
    %vm424 = vcmp.gt.f32.partialorder %v415, 20.0
    %vm425 = vcmp.gt.f32.partialorder %v417, 20.0
    %vm426 = vcmp.gt.f32.partialorder %v420, 20.0
    %vm427 = vcmp.gt.f32.partialorder %v422, 20.0
    %v428 = vmin.f32 %v415, 20.0
    %v429 = vmin.f32 %v417, 20.0
    %v430 = vmin.f32 %v420, 20.0
    %v431 = vmin.f32 %v422, 20.0
    %v432 = vmul.f32 %v428, 1.442695
    %v433 = vpow.pop %v432
    %v434 = vmul.f32 %v429, 1.442695
    %v435 = vpow.pop %v434
    %v436 = vmul.f32 %v430, 1.442695
    %v437 = vpow.pop %v436
    %v438 = vmul.f32 %v431, 1.442695
    %v439 = vpow.pop %v438
    %v440 = vadd.f32 %v433, 1.0
    %v441 = vadd.f32 %v435, 1.0
    %v442 = vadd.f32 %v437, 1.0
    %v443 = vadd.f32 %v439, 1.0
    %v444 = vlog2.pop %v440
    %v445 = vmul.f32 %v444, 0.6931472
    %v446 = vlog2.pop %v441
    %v447 = vmul.f32 %v446, 0.6931472
    %v448 = vlog2.pop %v442
    %v449 = vmul.f32 %v448, 0.6931472
    %v450 = vlog2.pop %v443
    %v451 = vmul.f32 %v450, 0.6931472
    %v452 = vsel %vm424, %v415, %v445
    %v453 = vsel %vm425, %v417, %v447
    %v454 = vsel %vm426, %v420, %v449
    %v455 = vsel %vm427, %v422, %v451
    %v456 = vld [vmem:[%s9] sm:$0xf]
    %v457 = vld [vmem:[%s9 + $0x4] sm:$0xf]
    %v458 = vld [vmem:[%s9 + $0x8] sm:$0xf]
    %v459 = vld [vmem:[%s9 + $0xc] sm:$0xf]
    %v460 = vld [vmem:[#allocation11] sm:$0xf]
    %v461 = vld [vmem:[#allocation11 + $0x4] sm:$0xf]
    %v462 = vld [vmem:[#allocation11 + $0x8] sm:$0xf]
    %v463 = vld [vmem:[#allocation11 + $0xc] sm:$0xf]
    %v464 = vpack.c.bf16 %v453, %v452
    %v465 = vpack.c.bf16 %v455, %v454
    %v470 = vunpack.c.l.b16 %v460
    %v471 = vunpack.c.l.b16 %v461
    %v472 = vunpack.c.l.b16 %v462
    %v473 = vunpack.c.l.b16 %v463
    %v474 = vpack.c.b16 %v471, %v470
    %v475 = vpack.c.b16 %v473, %v472
    %v477 = vsel %vm244, %v474, 0
    %v480 = vsel %vm244, %v475, 0
    %482 = vmatpush.bf16.msra.mxu0 0
    %483 = vmatpush.bf16.msra.mxu0 0
    %484 = vmatpush.bf16.msra.mxu0 0
    %485 = vmatpush.bf16.msra.mxu0 0
    %486 = vmatpush.bf16.msra.mxu0 0
    %487 = vmatpush.bf16.msra.mxu0 0
    %488 = vmatpush.bf16.msra.mxu0 %v465
    %489 = vmatpush.bf16.msra.mxu0 %v464
    %490 = vmatmul.bf16.gmra.mxu0 %v477
    %v491 = vpop.f32.mrf.mxu0
    %v492 = vadd.f32 0.0, %v491
    %v493 = vpop.f32.mrf.mxu0
    %v494 = vadd.f32 0.0, %v493
    %495 = vmatmul.bf16.gmra.mxu0 %v480
    %v496 = vpop.f32.mrf.mxu0
    %v497 = vadd.f32 0.0, %v496
    %v498 = vpop.f32.mrf.mxu0
    %v499 = vadd.f32 0.0, %v498
    %500 = vdwg.mxu0
    %v505 = vunpack.c.l.b16 %v456
    %v506 = vunpack.c.l.b16 %v457
    %v507 = vunpack.c.l.b16 %v458
    %v508 = vunpack.c.l.b16 %v459
    %v509 = vpack.c.b16 %v506, %v505
    %v510 = vpack.c.b16 %v508, %v507
    %v512 = vsel %vm198, %v509, 0
    %v515 = vsel %vm198, %v510, 0
    %517 = vmatpush.bf16.msra.mxu0 0
    %518 = vmatpush.bf16.msra.mxu0 0
    %519 = vmatpush.bf16.msra.mxu0 0
    %520 = vmatpush.bf16.msra.mxu0 0
    %521 = vmatpush.bf16.msra.mxu0 0
    %522 = vmatpush.bf16.msra.mxu0 0
    %523 = vmatpush.bf16.msra.mxu0 0
    %524 = vmatpush.bf16.msra.mxu0 %v196
    %525 = vmatmul.bf16.gmra.mxu0 %v512
    %v526 = vpop.f32.mrf.mxu0
    %v527 = vadd.f32 %v492, %v526
    %v528 = vpop.f32.mrf.mxu0
    %v529 = vadd.f32 %v494, %v528
    %530 = vmatmul.bf16.gmra.mxu0 %v515
    %v531 = vpop.f32.mrf.mxu0
    %v532 = vadd.f32 %v497, %v531
    %v533 = vpop.f32.mrf.mxu0
    %v534 = vadd.f32 %v499, %v533
    %535 = vdwg.mxu0
    %v536 = vld [vmem:[#allocation13] sm:$0xff]
    %v537 = vld [vmem:[#allocation13 + $0x8] sm:$0xff]
    %v538 = vld [vmem:[#allocation13 + $0x10] sm:$0xff]
    %v539 = vld [vmem:[#allocation13 + $0x18] sm:$0xff]
    %v540 = vadd.f32 %v527, %v536
    %v541 = vadd.f32 %v529, %v537
    %v542 = vadd.f32 %v532, %v538
    %v543 = vadd.f32 %v534, %v539
    %vm544 = vcmp.gt.f32.partialorder %v540, 20.0
    %vm545 = vcmp.gt.f32.partialorder %v541, 20.0
    %vm546 = vcmp.gt.f32.partialorder %v542, 20.0
    %vm547 = vcmp.gt.f32.partialorder %v543, 20.0
    %v548 = vmin.f32 %v540, 20.0
    %v549 = vmin.f32 %v541, 20.0
    %v550 = vmin.f32 %v542, 20.0
    %v551 = vmin.f32 %v543, 20.0
    %v552 = vmul.f32 %v548, 1.442695
    %v553 = vpow.pop %v552
    %v554 = vmul.f32 %v549, 1.442695
    %v555 = vpow.pop %v554
    %v556 = vmul.f32 %v550, 1.442695
    %v557 = vpow.pop %v556
    %v558 = vmul.f32 %v551, 1.442695
    %v559 = vpow.pop %v558
    %v560 = vadd.f32 %v553, 1.0
    %v561 = vadd.f32 %v555, 1.0
    %v562 = vadd.f32 %v557, 1.0
    %v563 = vadd.f32 %v559, 1.0
    %v564 = vlog2.pop %v560
    %v565 = vmul.f32 %v564, 0.6931472
    %v566 = vlog2.pop %v561
    %v567 = vmul.f32 %v566, 0.6931472
    %v568 = vlog2.pop %v562
    %v569 = vmul.f32 %v568, 0.6931472
    %v570 = vlog2.pop %v563
    %v571 = vmul.f32 %v570, 0.6931472
    %v572 = vsel %vm544, %v540, %v565
    %v573 = vsel %vm545, %v541, %v567
    %v574 = vsel %vm546, %v542, %v569
    %v575 = vsel %vm547, %v543, %v571
    %v576 = vld [vmem:[#allocation14] sm:$0xf]
    %v577 = vpack.c.bf16 %v573, %v572
    %v578 = vpack.c.bf16 %v575, %v574
    %v579 = vld [vmem:[%s13] sm:$0xff]
    %v581 = vsel %vm244, %v576, 0
    %583 = vmatpush.bf16.msra.mxu0 0
    %584 = vmatpush.bf16.msra.mxu0 0
    %585 = vmatpush.bf16.msra.mxu0 0
    %586 = vmatpush.bf16.msra.mxu0 0
    %587 = vmatpush.bf16.msra.mxu0 0
    %588 = vmatpush.bf16.msra.mxu0 0
    %589 = vmatpush.bf16.msra.mxu0 %v578
    %590 = vmatpush.bf16.msra.mxu0 %v577
    %591 = vmatmul.bf16.gmra.mxu0 %v581
    %v592 = vpop.f32.mrf.mxu0
    %v593 = vadd.f32 %v579, %v592
    %v594 = vpop.f32.mrf.mxu0
    %595 = vdwg.mxu0
    %596 = vst [vmem:[#allocation16] sm:$0xff] %v593
    // Predicated region
    $region90: #{tpu_custom_call.1} parent=1 // pred_check
      _
    $region91: #{tpu_custom_call.1} parent=1 // pred_check_branch
      %598 = sbr.rel (0) target = $region93
    $region92: #{tpu_custom_call.1} parent=1 // pred_region
      %600 = vsyncadd [#allocation4], 0
      %s602 = sshll.u32 [#allocation16], 4
      %s603 = int_to_ptr.vmem [resolvable:$true] %s602
      %s604 = sshll.u32 %s14, 4
      %s605 = int_to_ptr.hbm [resolvable:$true] %s604
      %607 = dma.vmem_to_hbm [thread:$0]  %s603, 128, %s605, [#allocation4]
    $region93: #{tpu_custom_call.1} parent=1 // pred_fallthru
      _
    // Predicated region
    $region94: #{tpu_custom_call.1} parent=1 // pred_check
      _
    $region95: #{tpu_custom_call.1} parent=1 // pred_check_branch
      %609 = sbr.rel (0) target = $region97
    $region96: #{tpu_custom_call.1} parent=1 // pred_region
      %611 = dma.done [#allocation4], 128
    $region97: #{tpu_custom_call.1} parent=1 // pred_fallthru
      _
    %612 = vsyncpa [#allocation3], 1
    %613 = vsyncpa [#allocation6], 1
    %614 = vsyncpa [#allocation9], 1
    %615 = vsyncpa [#allocation12], 1
    %616 = vsyncpa [#allocation15], 1
    %617 = vsyncpa [#allocation4], 1

</llo_original>
